<compile_context>
chip_gen: v7x
topology: tpu7x:2x2x1
jax: 0.10.0
libtpu: 0.0.40
codegen_flags: <defaults>
</compile_context>

<pallas_src>
import functools

import jax
import jax.numpy as jnp
from jax import lax
from jax.experimental import pallas as pl
from jax.experimental.pallas import tpu as pltpu


def _rigid_rows_store(out_ref, bb, px, py, pz, rot_ref, scale_ref, trans_ref,
                      b, valid):
    """Rotate -> |scale| -> translate one batch element and store its 3 rows.

    out_ref   : VMEM (nb, 3, Npad) output block
    bb        : static sub-batch index within the block
    px,py,pz  : (1, Npad) f32 coordinate rows (point index on lanes)
    rot_ref   : SMEM (B*9,)  row-major 3x3 rotations
    scale_ref : SMEM (B,)    per-batch scale (one scalar per batch element)
    trans_ref : SMEM (B*3,)  per-batch translation
    b         : (possibly dynamic) global batch index
    valid     : (1, Npad) f32, 1.0 for real points, 0.0 for padding lanes
    """
    s = jnp.abs(scale_ref[b])
    for j in range(3):                        # static unroll — VPU-only work
        c0 = rot_ref[b * 9 + 0 + j] * s       # scalar-unit multiplies
        c1 = rot_ref[b * 9 + 3 + j] * s
        c2 = rot_ref[b * 9 + 6 + j] * s
        tj = trans_ref[b * 3 + j]
        # Direct row store.  Masking the scalar translation with `valid` keeps
        # the padded lanes exactly zero (px/py/pz are already zero there).
        out_ref[bb, j:j + 1, :] = px * c0 + py * c1 + pz * c2 + tj * valid


def _pose_prior_kernel_shared(prior_ref, rot_ref, scale_ref, trans_ref, out_ref,
                              *, n_valid):
    """Shared Atlas template: prior_ref is one resident (3, Npad) VMEM block."""
    nb, _, npad = out_ref.shape
    base = pl.program_id(0) * nb
    px = prior_ref[0:1, :]                    # ref slices: zero-cost views
    py = prior_ref[1:2, :]
    pz = prior_ref[2:3, :]
    lane = lax.broadcasted_iota(jnp.int32, (1, npad), 1)
    valid = (lane < n_valid).astype(jnp.float32)
    for bb in range(nb):                      # bounded static unroll (nb <= 8)
        _rigid_rows_store(out_ref, bb, px, py, pz,
                          rot_ref, scale_ref, trans_ref, base + bb, valid)


def _pose_prior_kernel_batched(prior_ref, rot_ref, scale_ref, trans_ref, out_ref,
                               *, n_valid):
    """Per-batch prior: prior_ref block is (nb, 3, Npad)."""
    nb, _, npad = out_ref.shape
    base = pl.program_id(0) * nb
    lane = lax.broadcasted_iota(jnp.int32, (1, npad), 1)
    valid = (lane < n_valid).astype(jnp.float32)
    for bb in range(nb):                      # bounded static unroll (nb <= 8)
        px = prior_ref[bb, 0:1, :]
        py = prior_ref[bb, 1:2, :]
        pz = prior_ref[bb, 2:3, :]
        _rigid_rows_store(out_ref, bb, px, py, pz,
                          rot_ref, scale_ref, trans_ref, base + bb, valid)


def prepare_prior(prior):
    """One-time (model-init) prep of the Atlas prior — outside the hot loop.

    (N, 3)    -> shared lane-dense template (3, Npad)
    (B, N, 3) -> per-batch lane-dense prior (B, 3, Npad)
    with Npad = next multiple of 128 (642 -> 768), so all lane ops are unmasked.
    """
    prior = jnp.asarray(prior, dtype=jnp.float32)
    if prior.ndim == 2:
        n = prior.shape[0]
        npad = ((n + 127) // 128) * 128
        return jnp.pad(prior.T, ((0, 0), (0, npad - n)))               # (3, Npad)
    b, n, _ = prior.shape
    npad = ((n + 127) // 128) * 128
    prior_t = jnp.transpose(prior, (0, 2, 1))
    return jnp.pad(prior_t, ((0, 0), (0, 0), (0, npad - n)))           # (B, 3, Npad)


def _num_tensorcores():
    """TensorCores visible to one pallas_call (2 on v7x, 1 on v5e/v6e)."""
    try:
        info = pltpu.get_tpu_info()
        for attr in ("num_cores", "core_count", "num_tensorcores",
                     "tensorcore_count"):
            v = getattr(info, attr, None)
            if isinstance(v, int) and 1 <= v <= 8:
                return v
    except Exception:
        pass
    try:
        kind = jax.devices()[0].device_kind.lower()
        if "v7" in kind or "7x" in kind:
            return 2
    except Exception:
        pass
    return 1


def _choose_batch_block(batch, ncores):
    """Largest sub-batch per grid step: one step per TensorCore when possible,
    capped at 8 batch elements to bound static-unroll vreg live ranges."""
    if ncores and ncores > 1 and batch % ncores == 0:
        target = batch // ncores
    else:
        target = batch
    bb = max(1, min(target, 8))
    while batch % bb:
        bb -= 1
    return bb


@functools.partial(jax.jit, static_argnames=("n_points",))
def pose_prior_transform(prior_prepared, rot_matrix, scale, trans, n_points):
    """pose_prior = bmm(prior, rot) * |scale| + trans, in (B, 3, Npad) layout.

    prior_prepared: (3, Npad) shared template or (B, 3, Npad) per-batch prior
                    (from prepare_prior, done once at model init)
    rot_matrix    : (B, 3, 3)
    scale         : (B, 1) or (B,)   — one scalar per batch element
    trans         : (B, 3)
    returns       : (B, 3, Npad) f32, lane-dense; padded lanes are exactly 0.
    """
    shared = prior_prepared.ndim == 2
    npad = prior_prepared.shape[-1]
    batch = rot_matrix.shape[0]
    assert rot_matrix.shape == (batch, 3, 3)
    assert scale.size == batch, "expected exactly one scale scalar per batch"
    assert trans.size == batch * 3
    if not shared:
        assert prior_prepared.shape == (batch, 3, npad)

    # Flat f32 SMEM inputs: contiguous reshapes only (no concatenate/packing).
    rot_flat = jnp.asarray(rot_matrix, jnp.float32).reshape(batch * 9)
    scale_flat = jnp.asarray(scale, jnp.float32).reshape(batch)
    trans_flat = jnp.asarray(trans, jnp.float32).reshape(batch * 3)

    bb = _choose_batch_block(batch, _num_tensorcores())
    grid = (batch // bb,)
    smem_spec = pl.BlockSpec(memory_space=pltpu.MemorySpace.SMEM)
    if shared:
        kernel = functools.partial(_pose_prior_kernel_shared, n_valid=n_points)
        prior_spec = pl.BlockSpec((3, npad), lambda c: (0, 0))   # stays resident
    else:
        kernel = functools.partial(_pose_prior_kernel_batched, n_valid=n_points)
        prior_spec = pl.BlockSpec((bb, 3, npad), lambda c: (c, 0, 0))

    return pl.pallas_call(
        kernel,
        out_shape=jax.ShapeDtypeStruct((batch, 3, npad), jnp.float32),
        grid=grid,
        in_specs=[prior_spec, smem_spec, smem_spec, smem_spec],
        out_specs=pl.BlockSpec((bb, 3, npad), lambda c: (c, 0, 0)),
        compiler_params=pltpu.CompilerParams(dimension_semantics=("parallel",)),
    )(prior_prepared, rot_flat, scale_flat, trans_flat)


def pose_prior_points_layout(pose_prior_padded, n_points):
    """Convert kernel output (B, 3, Npad) back to PyTorch's (B, N, 3) layout
    (only needed where a downstream consumer cannot take (B, 3, N))."""
    return jnp.transpose(pose_prior_padded[:, :, :n_points], (0, 2, 1))


def refine_block_forward(image_crop, prior_prepared, uni_prior, camera,
                         rot_matrix, scale, trans, n_points):
    """Portion of RefineBlock.forward that is defined by the given source."""
    # TODO(synk): self.base_net / self.atlas_base_net (pretrained resnet18,
    #             return_inter=True) — external module, code not provided.
    # TODO(synk): self.pose_block = PoseMano(backbone) — external module; its
    #             outputs (rot_matrix, trans, scale, hand_*) are taken as inputs.
    # TODO(synk): project(pose_prior, camera, feature_maps) — external function.
    # TODO(synk): self.atlas_branch.forward_template(...) — external module.
    return pose_prior_transform(prior_prepared, rot_matrix, scale, trans, n_points)


if __name__ == "__main__":
    key = jax.random.PRNGKey(0)
    k1, k2, k3, k4, k5, k6, k7, k8 = jax.random.split(key, 8)

    B, N = 2, 642                                   # AtlasBranch points_nb=642
    image_crop = jax.random.normal(k1, (B, 3, 64, 64), dtype=jnp.float32)  # NCHW
    template   = jax.random.normal(k2, (N, 3),          dtype=jnp.float32)  # shared Atlas template
    uni_prior  = jax.random.normal(k3, (B, N, 3),       dtype=jnp.float32)
    camera     = jax.random.normal(k4, (B, 3, 3),       dtype=jnp.float32)

    # Deterministic stand-ins for the PoseMano outputs consumed by the hot path.
    rot_matrix = jax.random.normal(k5, (B, 3, 3), dtype=jnp.float32)
    scale      = jax.random.normal(k6, (B, 1),    dtype=jnp.float32)
    trans      = jax.random.normal(k7, (B, 3),    dtype=jnp.float32)

    # ---- Shared-template path (the usual case; template prepped once at init) ----
    prior_shared = prepare_prior(template)          # (3, 768)
    out_pad = refine_block_forward(image_crop, prior_shared, uni_prior, camera,
                                   rot_matrix, scale, trans, n_points=N)
    out_pad = jax.block_until_ready(out_pad)

    pose_prior = pose_prior_points_layout(out_pad, N)
    prior_b = jnp.broadcast_to(template[None], (B, N, 3))
    ref = (jnp.einsum('bnk,bkj->bnj', prior_b, rot_matrix)
           * jnp.abs(scale)[:, None, :]
           + trans[:, None, :])
    assert pose_prior.shape == (B, N, 3)
    assert bool(jnp.allclose(pose_prior, ref, atol=1e-4, rtol=1e-4))
    # Padded lanes must be exactly zero (no phantom points at `trans`).
    assert bool(jnp.all(out_pad[:, :, N:] == 0.0))

    # ---- Per-batch prior path (full original-module semantics) ----
    prior_per_batch = jax.random.normal(k8, (B, N, 3), dtype=jnp.float32)
    prior_prep_b = prepare_prior(prior_per_batch)   # (B, 3, 768)
    out_pad_b = pose_prior_transform(prior_prep_b, rot_matrix, scale, trans, N)
    out_pad_b = jax.block_until_ready(out_pad_b)

    pose_prior_b = pose_prior_points_layout(out_pad_b, N)
    ref_b = (jnp.einsum('bnk,bkj->bnj', prior_per_batch, rot_matrix)
             * jnp.abs(scale)[:, None, :]
             + trans[:, None, :])
    assert bool(jnp.allclose(pose_prior_b, ref_b, atol=1e-4, rtol=1e-4))
    assert bool(jnp.all(out_pad_b[:, :, N:] == 0.0))

    print("KERNEL_OK")
</pallas_src>

<mosaic_0001>
module attributes {stable_mosaic.version = 11 : i64} {
  func.func @_pose_prior_kernel_shared(%arg0: i32, %arg1: memref<3x768xf32, #tpu.memory_space<vmem>>, %arg2: memref<18xf32, #tpu.memory_space<smem>>, %arg3: memref<2xf32, #tpu.memory_space<smem>>, %arg4: memref<6xf32, #tpu.memory_space<smem>>, %arg5: memref<2x3x768xf32, #tpu.memory_space<vmem>>) attributes {dimension_semantics = [#tpu.dimension_semantics<parallel>], iteration_bounds = array<i64: 1>, scalar_prefetch = 0 : i64, scratch_operands = 0 : i64, tpu.core_type = #tpu.core_type<tc>, window_params = [{pipeline_mode = #tpu.pipeline_mode<synchronous>, transform_indices = @transform_0, window_bounds = array<i64: 3, 768>}, {transform_indices = @transform_1, window_bounds = array<i64: 18>}, {transform_indices = @transform_2, window_bounds = array<i64: 2>}, {transform_indices = @transform_3, window_bounds = array<i64: 6>}, {transform_indices = @transform_4, window_bounds = array<i64: 2, 3, 768>}]} {
    %c2_i32 = arith.constant 2 : i32
    %0 = arith.muli %arg0, %c2_i32 : i32
    %c0 = arith.constant 0 : index
    %c0_0 = arith.constant 0 : index
    %1 = vector.load %arg1[%c0, %c0_0] : memref<3x768xf32, #tpu.memory_space<vmem>>, vector<1x768xf32>
    %c1 = arith.constant 1 : index
    %c0_1 = arith.constant 0 : index
    %2 = vector.load %arg1[%c1, %c0_1] : memref<3x768xf32, #tpu.memory_space<vmem>>, vector<1x768xf32>
    %c2 = arith.constant 2 : index
    %c0_2 = arith.constant 0 : index
    %3 = vector.load %arg1[%c2, %c0_2] : memref<3x768xf32, #tpu.memory_space<vmem>>, vector<1x768xf32>
    %4 = tpu.iota {dimensions = array<i32: 1>} : vector<1x768xi32>
    %c642_i32 = arith.constant 642 : i32
    %5 = vector.broadcast %c642_i32 : i32 to vector<1x768xi32>
    %6 = arith.cmpi slt, %4, %5 : vector<1x768xi32>
    %7 = arith.extui %6 : vector<1x768xi1> to vector<1x768xi32>
    %8 = arith.sitofp %7 : vector<1x768xi32> to vector<1x768xf32>
    %c0_i32 = arith.constant 0 : i32
    %9 = arith.addi %0, %c0_i32 : i32
    %10 = arith.index_cast %9 : i32 to index
    %11 = memref.load %arg3[%10] : memref<2xf32, #tpu.memory_space<smem>>
    %12 = math.absf %11 : f32
    %c9_i32 = arith.constant 9 : i32
    %13 = arith.muli %9, %c9_i32 : i32
    %c0_i32_3 = arith.constant 0 : i32
    %14 = arith.addi %13, %c0_i32_3 : i32
    %c0_i32_4 = arith.constant 0 : i32
    %15 = arith.addi %14, %c0_i32_4 : i32
    %16 = arith.index_cast %15 : i32 to index
    %17 = memref.load %arg2[%16] : memref<18xf32, #tpu.memory_space<smem>>
    %18 = arith.mulf %17, %12 : f32
    %c9_i32_5 = arith.constant 9 : i32
    %19 = arith.muli %9, %c9_i32_5 : i32
    %c3_i32 = arith.constant 3 : i32
    %20 = arith.addi %19, %c3_i32 : i32
    %c0_i32_6 = arith.constant 0 : i32
    %21 = arith.addi %20, %c0_i32_6 : i32
    %22 = arith.index_cast %21 : i32 to index
    %23 = memref.load %arg2[%22] : memref<18xf32, #tpu.memory_space<smem>>
    %24 = arith.mulf %23, %12 : f32
    %c9_i32_7 = arith.constant 9 : i32
    %25 = arith.muli %9, %c9_i32_7 : i32
    %c6_i32 = arith.constant 6 : i32
    %26 = arith.addi %25, %c6_i32 : i32
    %c0_i32_8 = arith.constant 0 : i32
    %27 = arith.addi %26, %c0_i32_8 : i32
    %28 = arith.index_cast %27 : i32 to index
    %29 = memref.load %arg2[%28] : memref<18xf32, #tpu.memory_space<smem>>
    %30 = arith.mulf %29, %12 : f32
    %c3_i32_9 = arith.constant 3 : i32
    %31 = arith.muli %9, %c3_i32_9 : i32
    %c0_i32_10 = arith.constant 0 : i32
    %32 = arith.addi %31, %c0_i32_10 : i32
    %33 = arith.index_cast %32 : i32 to index
    %34 = memref.load %arg4[%33] : memref<6xf32, #tpu.memory_space<smem>>
    %35 = vector.broadcast %18 : f32 to vector<1x768xf32>
    %36 = arith.mulf %1, %35 : vector<1x768xf32>
    %37 = vector.broadcast %24 : f32 to vector<1x768xf32>
    %38 = arith.mulf %2, %37 : vector<1x768xf32>
    %39 = arith.addf %36, %38 : vector<1x768xf32>
    %40 = vector.broadcast %30 : f32 to vector<1x768xf32>
    %41 = arith.mulf %3, %40 : vector<1x768xf32>
    %42 = arith.addf %39, %41 : vector<1x768xf32>
    %43 = vector.broadcast %34 : f32 to vector<1x768xf32>
    %44 = arith.mulf %43, %8 : vector<1x768xf32>
    %45 = arith.addf %42, %44 : vector<1x768xf32>
    %c0_11 = arith.constant 0 : index
    %c0_12 = arith.constant 0 : index
    %c0_13 = arith.constant 0 : index
    %46 = vector.load %arg5[%c0_11, %c0_12, %c0_13] : memref<2x3x768xf32, #tpu.memory_space<vmem>>, vector<1x1x768xf32>
    %47 = vector.shape_cast %46 : vector<1x1x768xf32> to vector<1x768xf32>
    %48 = vector.shape_cast %45 : vector<1x768xf32> to vector<1x1x768xf32>
    tpu.vector_store %arg5[%c0_11, %c0_12, %c0_13], %48 {strides = array<i32>} : memref<2x3x768xf32, #tpu.memory_space<vmem>>, vector<1x1x768xf32>,
    %c9_i32_14 = arith.constant 9 : i32
    %49 = arith.muli %9, %c9_i32_14 : i32
    %c0_i32_15 = arith.constant 0 : i32
    %50 = arith.addi %49, %c0_i32_15 : i32
    %c1_i32 = arith.constant 1 : i32
    %51 = arith.addi %50, %c1_i32 : i32
    %52 = arith.index_cast %51 : i32 to index
    %53 = memref.load %arg2[%52] : memref<18xf32, #tpu.memory_space<smem>>
    %54 = arith.mulf %53, %12 : f32
    %c9_i32_16 = arith.constant 9 : i32
    %55 = arith.muli %9, %c9_i32_16 : i32
    %c3_i32_17 = arith.constant 3 : i32
    %56 = arith.addi %55, %c3_i32_17 : i32
    %c1_i32_18 = arith.constant 1 : i32
    %57 = arith.addi %56, %c1_i32_18 : i32
    %58 = arith.index_cast %57 : i32 to index
    %59 = memref.load %arg2[%58] : memref<18xf32, #tpu.memory_space<smem>>
    %60 = arith.mulf %59, %12 : f32
    %c9_i32_19 = arith.constant 9 : i32
    %61 = arith.muli %9, %c9_i32_19 : i32
    %c6_i32_20 = arith.constant 6 : i32
    %62 = arith.addi %61, %c6_i32_20 : i32
    %c1_i32_21 = arith.constant 1 : i32
    %63 = arith.addi %62, %c1_i32_21 : i32
    %64 = arith.index_cast %63 : i32 to index
    %65 = memref.load %arg2[%64] : memref<18xf32, #tpu.memory_space<smem>>
    %66 = arith.mulf %65, %12 : f32
    %c3_i32_22 = arith.constant 3 : i32
    %67 = arith.muli %9, %c3_i32_22 : i32
    %c1_i32_23 = arith.constant 1 : i32
    %68 = arith.addi %67, %c1_i32_23 : i32
    %69 = arith.index_cast %68 : i32 to index
    %70 = memref.load %arg4[%69] : memref<6xf32, #tpu.memory_space<smem>>
    %71 = vector.broadcast %54 : f32 to vector<1x768xf32>
    %72 = arith.mulf %1, %71 : vector<1x768xf32>
    %73 = vector.broadcast %60 : f32 to vector<1x768xf32>
    %74 = arith.mulf %2, %73 : vector<1x768xf32>
    %75 = arith.addf %72, %74 : vector<1x768xf32>
    %76 = vector.broadcast %66 : f32 to vector<1x768xf32>
    %77 = arith.mulf %3, %76 : vector<1x768xf32>
    %78 = arith.addf %75, %77 : vector<1x768xf32>
    %79 = vector.broadcast %70 : f32 to vector<1x768xf32>
    %80 = arith.mulf %79, %8 : vector<1x768xf32>
    %81 = arith.addf %78, %80 : vector<1x768xf32>
    %c0_24 = arith.constant 0 : index
    %c1_25 = arith.constant 1 : index
    %c0_26 = arith.constant 0 : index
    %82 = vector.load %arg5[%c0_24, %c1_25, %c0_26] : memref<2x3x768xf32, #tpu.memory_space<vmem>>, vector<1x1x768xf32>
    %83 = vector.shape_cast %82 : vector<1x1x768xf32> to vector<1x768xf32>
    %84 = vector.shape_cast %81 : vector<1x768xf32> to vector<1x1x768xf32>
    tpu.vector_store %arg5[%c0_24, %c1_25, %c0_26], %84 {strides = array<i32>} : memref<2x3x768xf32, #tpu.memory_space<vmem>>, vector<1x1x768xf32>,
    %c9_i32_27 = arith.constant 9 : i32
    %85 = arith.muli %9, %c9_i32_27 : i32
    %c0_i32_28 = arith.constant 0 : i32
    %86 = arith.addi %85, %c0_i32_28 : i32
    %c2_i32_29 = arith.constant 2 : i32
    %87 = arith.addi %86, %c2_i32_29 : i32
    %88 = arith.index_cast %87 : i32 to index
    %89 = memref.load %arg2[%88] : memref<18xf32, #tpu.memory_space<smem>>
    %90 = arith.mulf %89, %12 : f32
    %c9_i32_30 = arith.constant 9 : i32
    %91 = arith.muli %9, %c9_i32_30 : i32
    %c3_i32_31 = arith.constant 3 : i32
    %92 = arith.addi %91, %c3_i32_31 : i32
    %c2_i32_32 = arith.constant 2 : i32
    %93 = arith.addi %92, %c2_i32_32 : i32
    %94 = arith.index_cast %93 : i32 to index
    %95 = memref.load %arg2[%94] : memref<18xf32, #tpu.memory_space<smem>>
    %96 = arith.mulf %95, %12 : f32
    %c9_i32_33 = arith.constant 9 : i32
    %97 = arith.muli %9, %c9_i32_33 : i32
    %c6_i32_34 = arith.constant 6 : i32
    %98 = arith.addi %97, %c6_i32_34 : i32
    %c2_i32_35 = arith.constant 2 : i32
    %99 = arith.addi %98, %c2_i32_35 : i32
    %100 = arith.index_cast %99 : i32 to index
    %101 = memref.load %arg2[%100] : memref<18xf32, #tpu.memory_space<smem>>
    %102 = arith.mulf %101, %12 : f32
    %c3_i32_36 = arith.constant 3 : i32
    %103 = arith.muli %9, %c3_i32_36 : i32
    %c2_i32_37 = arith.constant 2 : i32
    %104 = arith.addi %103, %c2_i32_37 : i32
    %105 = arith.index_cast %104 : i32 to index
    %106 = memref.load %arg4[%105] : memref<6xf32, #tpu.memory_space<smem>>
    %107 = vector.broadcast %90 : f32 to vector<1x768xf32>
    %108 = arith.mulf %1, %107 : vector<1x768xf32>
    %109 = vector.broadcast %96 : f32 to vector<1x768xf32>
    %110 = arith.mulf %2, %109 : vector<1x768xf32>
    %111 = arith.addf %108, %110 : vector<1x768xf32>
    %112 = vector.broadcast %102 : f32 to vector<1x768xf32>
    %113 = arith.mulf %3, %112 : vector<1x768xf32>
    %114 = arith.addf %111, %113 : vector<1x768xf32>
    %115 = vector.broadcast %106 : f32 to vector<1x768xf32>
    %116 = arith.mulf %115, %8 : vector<1x768xf32>
    %117 = arith.addf %114, %116 : vector<1x768xf32>
    %c0_38 = arith.constant 0 : index
    %c2_39 = arith.constant 2 : index
    %c0_40 = arith.constant 0 : index
    %118 = vector.load %arg5[%c0_38, %c2_39, %c0_40] : memref<2x3x768xf32, #tpu.memory_space<vmem>>, vector<1x1x768xf32>
    %119 = vector.shape_cast %118 : vector<1x1x768xf32> to vector<1x768xf32>
    %120 = vector.shape_cast %117 : vector<1x768xf32> to vector<1x1x768xf32>
    tpu.vector_store %arg5[%c0_38, %c2_39, %c0_40], %120 {strides = array<i32>} : memref<2x3x768xf32, #tpu.memory_space<vmem>>, vector<1x1x768xf32>,
    %c1_i32_41 = arith.constant 1 : i32
    %121 = arith.addi %0, %c1_i32_41 : i32
    %122 = arith.index_cast %121 : i32 to index
    %123 = memref.load %arg3[%122] : memref<2xf32, #tpu.memory_space<smem>>
    %124 = math.absf %123 : f32
    %c9_i32_42 = arith.constant 9 : i32
    %125 = arith.muli %121, %c9_i32_42 : i32
    %c0_i32_43 = arith.constant 0 : i32
    %126 = arith.addi %125, %c0_i32_43 : i32
    %c0_i32_44 = arith.constant 0 : i32
    %127 = arith.addi %126, %c0_i32_44 : i32
    %128 = arith.index_cast %127 : i32 to index
    %129 = memref.load %arg2[%128] : memref<18xf32, #tpu.memory_space<smem>>
    %130 = arith.mulf %129, %124 : f32
    %c9_i32_45 = arith.constant 9 : i32
    %131 = arith.muli %121, %c9_i32_45 : i32
    %c3_i32_46 = arith.constant 3 : i32
    %132 = arith.addi %131, %c3_i32_46 : i32
    %c0_i32_47 = arith.constant 0 : i32
    %133 = arith.addi %132, %c0_i32_47 : i32
    %134 = arith.index_cast %133 : i32 to index
    %135 = memref.load %arg2[%134] : memref<18xf32, #tpu.memory_space<smem>>
    %136 = arith.mulf %135, %124 : f32
    %c9_i32_48 = arith.constant 9 : i32
    %137 = arith.muli %121, %c9_i32_48 : i32
    %c6_i32_49 = arith.constant 6 : i32
    %138 = arith.addi %137, %c6_i32_49 : i32
    %c0_i32_50 = arith.constant 0 : i32
    %139 = arith.addi %138, %c0_i32_50 : i32
    %140 = arith.index_cast %139 : i32 to index
    %141 = memref.load %arg2[%140] : memref<18xf32, #tpu.memory_space<smem>>
    %142 = arith.mulf %141, %124 : f32
    %c3_i32_51 = arith.constant 3 : i32
    %143 = arith.muli %121, %c3_i32_51 : i32
    %c0_i32_52 = arith.constant 0 : i32
    %144 = arith.addi %143, %c0_i32_52 : i32
    %145 = arith.index_cast %144 : i32 to index
    %146 = memref.load %arg4[%145] : memref<6xf32, #tpu.memory_space<smem>>
    %147 = vector.broadcast %130 : f32 to vector<1x768xf32>
    %148 = arith.mulf %1, %147 : vector<1x768xf32>
    %149 = vector.broadcast %136 : f32 to vector<1x768xf32>
    %150 = arith.mulf %2, %149 : vector<1x768xf32>
    %151 = arith.addf %148, %150 : vector<1x768xf32>
    %152 = vector.broadcast %142 : f32 to vector<1x768xf32>
    %153 = arith.mulf %3, %152 : vector<1x768xf32>
    %154 = arith.addf %151, %153 : vector<1x768xf32>
    %155 = vector.broadcast %146 : f32 to vector<1x768xf32>
    %156 = arith.mulf %155, %8 : vector<1x768xf32>
    %157 = arith.addf %154, %156 : vector<1x768xf32>
    %c1_53 = arith.constant 1 : index
    %c0_54 = arith.constant 0 : index
    %c0_55 = arith.constant 0 : index
    %158 = vector.load %arg5[%c1_53, %c0_54, %c0_55] : memref<2x3x768xf32, #tpu.memory_space<vmem>>, vector<1x1x768xf32>
    %159 = vector.shape_cast %158 : vector<1x1x768xf32> to vector<1x768xf32>
    %160 = vector.shape_cast %157 : vector<1x768xf32> to vector<1x1x768xf32>
    tpu.vector_store %arg5[%c1_53, %c0_54, %c0_55], %160 {strides = array<i32>} : memref<2x3x768xf32, #tpu.memory_space<vmem>>, vector<1x1x768xf32>,
    %c9_i32_56 = arith.constant 9 : i32
    %161 = arith.muli %121, %c9_i32_56 : i32
    %c0_i32_57 = arith.constant 0 : i32
    %162 = arith.addi %161, %c0_i32_57 : i32
    %c1_i32_58 = arith.constant 1 : i32
    %163 = arith.addi %162, %c1_i32_58 : i32
    %164 = arith.index_cast %163 : i32 to index
    %165 = memref.load %arg2[%164] : memref<18xf32, #tpu.memory_space<smem>>
    %166 = arith.mulf %165, %124 : f32
    %c9_i32_59 = arith.constant 9 : i32
    %167 = arith.muli %121, %c9_i32_59 : i32
    %c3_i32_60 = arith.constant 3 : i32
    %168 = arith.addi %167, %c3_i32_60 : i32
    %c1_i32_61 = arith.constant 1 : i32
    %169 = arith.addi %168, %c1_i32_61 : i32
    %170 = arith.index_cast %169 : i32 to index
    %171 = memref.load %arg2[%170] : memref<18xf32, #tpu.memory_space<smem>>
    %172 = arith.mulf %171, %124 : f32
    %c9_i32_62 = arith.constant 9 : i32
    %173 = arith.muli %121, %c9_i32_62 : i32
    %c6_i32_63 = arith.constant 6 : i32
    %174 = arith.addi %173, %c6_i32_63 : i32
    %c1_i32_64 = arith.constant 1 : i32
    %175 = arith.addi %174, %c1_i32_64 : i32
    %176 = arith.index_cast %175 : i32 to index
    %177 = memref.load %arg2[%176] : memref<18xf32, #tpu.memory_space<smem>>
    %178 = arith.mulf %177, %124 : f32
    %c3_i32_65 = arith.constant 3 : i32
    %179 = arith.muli %121, %c3_i32_65 : i32
    %c1_i32_66 = arith.constant 1 : i32
    %180 = arith.addi %179, %c1_i32_66 : i32
    %181 = arith.index_cast %180 : i32 to index
    %182 = memref.load %arg4[%181] : memref<6xf32, #tpu.memory_space<smem>>
    %183 = vector.broadcast %166 : f32 to vector<1x768xf32>
    %184 = arith.mulf %1, %183 : vector<1x768xf32>
    %185 = vector.broadcast %172 : f32 to vector<1x768xf32>
    %186 = arith.mulf %2, %185 : vector<1x768xf32>
    %187 = arith.addf %184, %186 : vector<1x768xf32>
    %188 = vector.broadcast %178 : f32 to vector<1x768xf32>
    %189 = arith.mulf %3, %188 : vector<1x768xf32>
    %190 = arith.addf %187, %189 : vector<1x768xf32>
    %191 = vector.broadcast %182 : f32 to vector<1x768xf32>
    %192 = arith.mulf %191, %8 : vector<1x768xf32>
    %193 = arith.addf %190, %192 : vector<1x768xf32>
    %c1_67 = arith.constant 1 : index
    %c1_68 = arith.constant 1 : index
    %c0_69 = arith.constant 0 : index
    %194 = vector.load %arg5[%c1_67, %c1_68, %c0_69] : memref<2x3x768xf32, #tpu.memory_space<vmem>>, vector<1x1x768xf32>
    %195 = vector.shape_cast %194 : vector<1x1x768xf32> to vector<1x768xf32>
    %196 = vector.shape_cast %193 : vector<1x768xf32> to vector<1x1x768xf32>
    tpu.vector_store %arg5[%c1_67, %c1_68, %c0_69], %196 {strides = array<i32>} : memref<2x3x768xf32, #tpu.memory_space<vmem>>, vector<1x1x768xf32>,
    %c9_i32_70 = arith.constant 9 : i32
    %197 = arith.muli %121, %c9_i32_70 : i32
    %c0_i32_71 = arith.constant 0 : i32
    %198 = arith.addi %197, %c0_i32_71 : i32
    %c2_i32_72 = arith.constant 2 : i32
    %199 = arith.addi %198, %c2_i32_72 : i32
    %200 = arith.index_cast %199 : i32 to index
    %201 = memref.load %arg2[%200] : memref<18xf32, #tpu.memory_space<smem>>
    %202 = arith.mulf %201, %124 : f32
    %c9_i32_73 = arith.constant 9 : i32
    %203 = arith.muli %121, %c9_i32_73 : i32
    %c3_i32_74 = arith.constant 3 : i32
    %204 = arith.addi %203, %c3_i32_74 : i32
    %c2_i32_75 = arith.constant 2 : i32
    %205 = arith.addi %204, %c2_i32_75 : i32
    %206 = arith.index_cast %205 : i32 to index
    %207 = memref.load %arg2[%206] : memref<18xf32, #tpu.memory_space<smem>>
    %208 = arith.mulf %207, %124 : f32
    %c9_i32_76 = arith.constant 9 : i32
    %209 = arith.muli %121, %c9_i32_76 : i32
    %c6_i32_77 = arith.constant 6 : i32
    %210 = arith.addi %209, %c6_i32_77 : i32
    %c2_i32_78 = arith.constant 2 : i32
    %211 = arith.addi %210, %c2_i32_78 : i32
    %212 = arith.index_cast %211 : i32 to index
    %213 = memref.load %arg2[%212] : memref<18xf32, #tpu.memory_space<smem>>
    %214 = arith.mulf %213, %124 : f32
    %c3_i32_79 = arith.constant 3 : i32
    %215 = arith.muli %121, %c3_i32_79 : i32
    %c2_i32_80 = arith.constant 2 : i32
    %216 = arith.addi %215, %c2_i32_80 : i32
    %217 = arith.index_cast %216 : i32 to index
    %218 = memref.load %arg4[%217] : memref<6xf32, #tpu.memory_space<smem>>
    %219 = vector.broadcast %202 : f32 to vector<1x768xf32>
    %220 = arith.mulf %1, %219 : vector<1x768xf32>
    %221 = vector.broadcast %208 : f32 to vector<1x768xf32>
    %222 = arith.mulf %2, %221 : vector<1x768xf32>
    %223 = arith.addf %220, %222 : vector<1x768xf32>
    %224 = vector.broadcast %214 : f32 to vector<1x768xf32>
    %225 = arith.mulf %3, %224 : vector<1x768xf32>
    %226 = arith.addf %223, %225 : vector<1x768xf32>
    %227 = vector.broadcast %218 : f32 to vector<1x768xf32>
    %228 = arith.mulf %227, %8 : vector<1x768xf32>
    %229 = arith.addf %226, %228 : vector<1x768xf32>
    %c1_81 = arith.constant 1 : index
    %c2_82 = arith.constant 2 : index
    %c0_83 = arith.constant 0 : index
    %230 = vector.load %arg5[%c1_81, %c2_82, %c0_83] : memref<2x3x768xf32, #tpu.memory_space<vmem>>, vector<1x1x768xf32>
    %231 = vector.shape_cast %230 : vector<1x1x768xf32> to vector<1x768xf32>
    %232 = vector.shape_cast %229 : vector<1x768xf32> to vector<1x1x768xf32>
    tpu.vector_store %arg5[%c1_81, %c2_82, %c0_83], %232 {strides = array<i32>} : memref<2x3x768xf32, #tpu.memory_space<vmem>>, vector<1x1x768xf32>,
    return
  }
  func.func @transform_0(%arg0: i32) -> (i32, i32) {
    %c0_i32 = arith.constant 0 : i32
    %c0_i32_0 = arith.constant 0 : i32
    %c0_i32_1 = arith.constant 0 : i32
    return %c0_i32, %c0_i32_0 : i32, i32
  }
  func.func @transform_1(%arg0: i32) -> i32 {
    %c0_i32 = arith.constant 0 : i32
    %c0_i32_0 = arith.constant 0 : i32
    return %c0_i32 : i32
  }
  func.func @transform_2(%arg0: i32) -> i32 {
    %c0_i32 = arith.constant 0 : i32
    %c0_i32_0 = arith.constant 0 : i32
    return %c0_i32 : i32
  }
  func.func @transform_3(%arg0: i32) -> i32 {
    %c0_i32 = arith.constant 0 : i32
    %c0_i32_0 = arith.constant 0 : i32
    return %c0_i32 : i32
  }
  func.func @transform_4(%arg0: i32) -> (i32, i32, i32) {
    %c0_i32 = arith.constant 0 : i32
    %c0_i32_0 = arith.constant 0 : i32
    %c0_i32_1 = arith.constant 0 : i32
    return %arg0, %c0_i32, %c0_i32_0 : i32, i32, i32
  }
}

</mosaic_0001>

<llo_original>
// kernel: pose_prior_transform.1
$region0: #{pose_prior_transform.1}
  #allocation0 [shape = 'u32[]', space=smem, size = 0x4, offset = 0x4, fixed_abs, tag = 'smem constant byte address 0x4 - core index']
  #allocation1 [shape = 'u32[144,128]{1,0:T(1,128)}', space=vmem, size = 0x12000, scoped, tag = 'internal scratch']
  %s0 = inlined_call_operand.vmem [shape: f32[3,768], index: 0, kind: input, shape index: {}]
  %s1 = inlined_call_operand.vmem [shape: f32[18], index: 1, kind: input, shape index: {}]
  %s2 = inlined_call_operand.vmem [shape: f32[2], index: 2, kind: input, shape index: {}]
  %s3 = inlined_call_operand.vmem [shape: f32[6], index: 3, kind: input, shape index: {}]
  %s4 = inlined_call_operand.vmem [shape: f32[2,3,768], index: 4, kind: output, shape index: {}]
  %s5 = sld [smem:[#allocation0]]
  $region38: #{pose_prior_transform.1} parent=0
    _
  %s7 = ssub.s32 1, %s5
  %s8 = scalar_select 0, %s7, %s5
  $region1: #{pose_prior_transform.1} parent=0
    #allocation2 [shape = 'u8[512]{0}', space=smem, size = 0x200, scoped, tag = 'input window, operand 1, single buffered']
    #allocation3 [shape = 's32[1]{0}', space=sflag, size = 0x4, scoped, tag = 'scoped memory for pose_prior_transform.1']
    #allocation4 [shape = 'u8[512]{0}', space=smem, size = 0x200, scoped, tag = 'input window, operand 2, single buffered']
    #allocation5 [shape = 's32[1]{0}', space=sflag, size = 0x4, scoped, tag = 'scoped memory for pose_prior_transform.1']
    #allocation6 [shape = 'u8[512]{0}', space=smem, size = 0x200, scoped, tag = 'input window, operand 3, single buffered']
    %9 = vsyncpa [#allocation3], 0
    %10 = vsyncpa [#allocation5], 0
    // Predicated region
    $region2: #{pose_prior_transform.1} parent=1 // pred_check
      _
    $region3: #{pose_prior_transform.1} parent=1 // pred_check_branch
      %12 = sbr.rel (0) target = $region5
    $region4: #{pose_prior_transform.1} parent=1 // pred_region
      _
    $region5: #{pose_prior_transform.1} parent=1 // pred_fallthru
      _
    // Predicated region
    $region6: #{pose_prior_transform.1} parent=1 // pred_check
      _
    $region7: #{pose_prior_transform.1} parent=1 // pred_check_branch
      %14 = sbr.rel (0) target = $region9
    $region8: #{pose_prior_transform.1} parent=1 // pred_region
      %s16 = ssub.s32 16, 16
      %17 = vsyncadd [#allocation3], %s16
      %s19 = sshll.u32 %s1, 4
      %s20 = int_to_ptr.vmem [resolvable:$true] %s19
      %22 = dma.vmem_to_smem %s20, 16, [#allocation2], [#allocation3]
    $region9: #{pose_prior_transform.1} parent=1 // pred_fallthru
      _
    // Predicated region
    $region10: #{pose_prior_transform.1} parent=1 // pred_check
      _
    $region11: #{pose_prior_transform.1} parent=1 // pred_check_branch
      %24 = sbr.rel (0) target = $region13
    $region12: #{pose_prior_transform.1} parent=1 // pred_region
      %s26 = ssub.s32 16, 16
      %27 = vsyncadd [#allocation5], %s26
      %s29 = sshll.u32 %s2, 4
      %s30 = int_to_ptr.vmem [resolvable:$true] %s29
      %32 = dma.vmem_to_smem %s30, 16, [#allocation4], [#allocation5]
    $region13: #{pose_prior_transform.1} parent=1 // pred_fallthru
      _
    // Predicated region
    $region14: #{pose_prior_transform.1} parent=1 // pred_check
      _
    $region15: #{pose_prior_transform.1} parent=1 // pred_check_branch
      %34 = sbr.rel (0) target = $region17
    $region16: #{pose_prior_transform.1} parent=1 // pred_region
      %s36 = ssub.s32 16, 16
      %37 = vsyncadd [#allocation5], %s36
      %s39 = sshll.u32 %s3, 4
      %s40 = int_to_ptr.vmem [resolvable:$true] %s39
      %42 = dma.vmem_to_smem %s40, 16, [#allocation6], [#allocation5]
    $region17: #{pose_prior_transform.1} parent=1 // pred_fallthru
      _
    // Predicated region
    $region18: #{pose_prior_transform.1} parent=1 // pred_check
      _
    $region19: #{pose_prior_transform.1} parent=1 // pred_check_branch
      %44 = sbr.rel (0) target = $region21
    $region20: #{pose_prior_transform.1} parent=1 // pred_region
      %45 = dma.done [#allocation3], 16
    $region21: #{pose_prior_transform.1} parent=1 // pred_fallthru
      _
    // Predicated region
    $region22: #{pose_prior_transform.1} parent=1 // pred_check
      _
    $region23: #{pose_prior_transform.1} parent=1 // pred_check_branch
      %47 = sbr.rel (0) target = $region25
    $region24: #{pose_prior_transform.1} parent=1 // pred_region
      %48 = dma.done [#allocation5], 16
    $region25: #{pose_prior_transform.1} parent=1 // pred_fallthru
      _
    // Predicated region
    $region26: #{pose_prior_transform.1} parent=1 // pred_check
      _
    $region27: #{pose_prior_transform.1} parent=1 // pred_check_branch
      %50 = sbr.rel (0) target = $region29
    $region28: #{pose_prior_transform.1} parent=1 // pred_region
      %51 = dma.done [#allocation5], 16
    $region29: #{pose_prior_transform.1} parent=1 // pred_fallthru
      _
    %52 = sfence
    %s53 = smul.u32 0, 2
    %v54 = vld [vmem:[%s0] ss:$4 sm:$0x3f]
    %s55 = scalar_lea.vmem %s0, 1
    %v56 = vld [vmem:[%s55] ss:$4 sm:$0x3f]
    %s57 = scalar_lea.vmem %s0, 2
    %v58 = vld [vmem:[%s57] ss:$4 sm:$0x3f]
    %v59 = vlaneseq
    %v60 = vand.u32 %v59, 127
    %v61 = vadd.s32 %v60, 128
    %v62 = vadd.s32 %v60, 256
    %v63 = vadd.s32 %v60, 384
    %v64 = vadd.s32 %v60, 512
    %v65 = vadd.s32 %v60, 640
    %vm66 = vcmp.lt.s32.totalorder %v60, 642
    %vm67 = vcmp.lt.s32.totalorder %v61, 642
    %vm68 = vcmp.lt.s32.totalorder %v62, 642
    %vm69 = vcmp.lt.s32.totalorder %v63, 642
    %vm70 = vcmp.lt.s32.totalorder %v64, 642
    %vm71 = vcmp.lt.s32.totalorder %v65, 642
    %v72 = vsel %vm66, 1, 0
    %v73 = vsel %vm67, 1, 0
    %v74 = vsel %vm68, 1, 0
    %v75 = vsel %vm69, 1, 0
    %v76 = vsel %vm70, 1, 0
    %v77 = vsel %vm71, 1, 0
    %v78 = vcvt.s32.f32 %v72
    %v79 = vcvt.s32.f32 %v73
    %v80 = vcvt.s32.f32 %v74
    %v81 = vcvt.s32.f32 %v75
    %v82 = vcvt.s32.f32 %v76
    %v83 = vcvt.s32.f32 %v77
    %s84 = sld [smem:[#allocation4 + %s53]]
    %s85 = sand.u32 2147483647, %s84
    %s86 = smul.u32 0, 18
    %s87 = sld [smem:[#allocation2 + %s86]]
    %s88 = smul.f32 %s87, %s85
    %s89 = sadd.s32 %s86, 3
    %s90 = sld [smem:[#allocation2 + %s89]]
    %s91 = smul.f32 %s90, %s85
    %s92 = sadd.s32 %s86, 6
    %s93 = sld [smem:[#allocation2 + %s92]]
    %s94 = smul.f32 %s93, %s85
    %s95 = smul.u32 0, 6
    %s96 = sld [smem:[#allocation6 + %s95]]
    %v97 = vstv %s88
    %v98 = vmul.f32 %v54, %v97
    %v99 = vstv %s91
    %v100 = vmul.f32 %v56, %v99
    %v101 = vadd.f32 %v98, %v100
    %v102 = vstv %s94
    %v103 = vmul.f32 %v58, %v102
    %v104 = vadd.f32 %v101, %v103
    %v105 = vstv %s96
    %v106 = vmul.f32 %v105, %v78
    %v107 = vmul.f32 %v105, %v79
    %v108 = vmul.f32 %v105, %v80
    %v109 = vmul.f32 %v105, %v81
    %v110 = vmul.f32 %v105, %v82
    %v111 = vmul.f32 %v105, %v83
    %v118 = vcombine.low %v106, %v107
    %v119 = vcombine.low %v108, %v109
    %v120 = vcombine.low %v110, %v111
    %v122 = vunpack.c.l.s4 1966171168
    %v123 = vunpack.c.0.s8 %v122
    %v124 = vlaneseq
    %v125 = vshrl.u32 %v124, 7
    %v126 = vsub.s32 %v123, %v125
    %v127 = vrot.slane %v118, %v126
    %v129 = vunpack.c.l.s4 1966171168
    %v130 = vunpack.c.0.s8 %v129
    %v131 = vlaneseq
    %v132 = vshrl.u32 %v131, 7
    %v133 = vsub.s32 %v130, %v132
    %v134 = vrot.slane %v119, %v133
    %v136 = vunpack.c.l.s4 1966171168
    %v137 = vunpack.c.0.s8 %v136
    %v138 = vlaneseq
    %v139 = vshrl.u32 %v138, 7
    %v140 = vsub.s32 %v137, %v139
    %v141 = vrot.slane %v120, %v140
    %v142 = vcombine.low %v127, %v134
    %v144 = vunpack.c.l.s4 1966171168
    %v145 = vunpack.c.0.s8 %v144
    %v146 = vlaneseq
    %v147 = vshrl.u32 %v146, 7
    %v148 = vsub.s32 %v145, %v147
    %v149 = vrot.slane %v142, %v148
    %v151 = vunpack.c.l.s4 1966171168
    %v152 = vunpack.c.0.s8 %v151
    %v153 = vlaneseq
    %v154 = vshrl.u32 %v153, 7
    %v155 = vsub.s32 %v152, %v154
    %v156 = vrot.slane %v141, %v155
    %v157 = vcombine.low %v149, %v156
    %v159 = vadd.f32 %v104, %v157
    %v160 = vlaneseq
    %vm161 = vcmp.ge.s32.totalorder %v160, 0
    %vm162 = vcmp.lt.s32.totalorder %v160, 768
    %vm163 = vmand %vm161, %vm162
    %164 = vst.msk [vmem:[%s4] ss:$4 sm:$0x3f] %vm163, %v159
    %s165 = sadd.s32 %s86, 1
    %s166 = sld [smem:[#allocation2 + %s165]]
    %s167 = smul.f32 %s166, %s85
    %s168 = sadd.s32 %s86, 4
    %s169 = sld [smem:[#allocation2 + %s168]]
    %s170 = smul.f32 %s169, %s85
    %s171 = sadd.s32 %s86, 7
    %s172 = sld [smem:[#allocation2 + %s171]]
    %s173 = smul.f32 %s172, %s85
    %s174 = sadd.s32 %s95, 1
    %s175 = sld [smem:[#allocation6 + %s174]]
    %v176 = vstv %s167
    %v177 = vmul.f32 %v54, %v176
    %v178 = vstv %s170
    %v179 = vmul.f32 %v56, %v178
    %v180 = vadd.f32 %v177, %v179
    %v181 = vstv %s173
    %v182 = vmul.f32 %v58, %v181
    %v183 = vadd.f32 %v180, %v182
    %v184 = vstv %s175
    %v185 = vmul.f32 %v184, %v78
    %v186 = vmul.f32 %v184, %v79
    %v187 = vmul.f32 %v184, %v80
    %v188 = vmul.f32 %v184, %v81
    %v189 = vmul.f32 %v184, %v82
    %v190 = vmul.f32 %v184, %v83
    %v197 = vcombine.low %v185, %v186
    %v198 = vcombine.low %v187, %v188
    %v199 = vcombine.low %v189, %v190
    %v201 = vunpack.c.l.s4 1966171168
    %v202 = vunpack.c.0.s8 %v201
    %v203 = vlaneseq
    %v204 = vshrl.u32 %v203, 7
    %v205 = vsub.s32 %v202, %v204
    %v206 = vrot.slane %v197, %v205
    %v208 = vunpack.c.l.s4 1966171168
    %v209 = vunpack.c.0.s8 %v208
    %v210 = vlaneseq
    %v211 = vshrl.u32 %v210, 7
    %v212 = vsub.s32 %v209, %v211
    %v213 = vrot.slane %v198, %v212
    %v215 = vunpack.c.l.s4 1966171168
    %v216 = vunpack.c.0.s8 %v215
    %v217 = vlaneseq
    %v218 = vshrl.u32 %v217, 7
    %v219 = vsub.s32 %v216, %v218
    %v220 = vrot.slane %v199, %v219
    %v221 = vcombine.low %v206, %v213
    %v223 = vunpack.c.l.s4 1966171168
    %v224 = vunpack.c.0.s8 %v223
    %v225 = vlaneseq
    %v226 = vshrl.u32 %v225, 7
    %v227 = vsub.s32 %v224, %v226
    %v228 = vrot.slane %v221, %v227
    %v230 = vunpack.c.l.s4 1966171168
    %v231 = vunpack.c.0.s8 %v230
    %v232 = vlaneseq
    %v233 = vshrl.u32 %v232, 7
    %v234 = vsub.s32 %v231, %v233
    %v235 = vrot.slane %v220, %v234
    %v236 = vcombine.low %v228, %v235
    %v238 = vadd.f32 %v183, %v236
    %s239 = scalar_lea.vmem %s4, 1
    %240 = vst.msk [vmem:[%s239] ss:$4 sm:$0x3f] %vm163, %v238
    %s241 = sadd.s32 %s86, 2
    %s242 = sld [smem:[#allocation2 + %s241]]
    %s243 = smul.f32 %s242, %s85
    %s244 = sadd.s32 %s86, 5
    %s245 = sld [smem:[#allocation2 + %s244]]
    %s246 = smul.f32 %s245, %s85
    %s247 = sadd.s32 %s86, 8
    %s248 = sld [smem:[#allocation2 + %s247]]
    %s249 = smul.f32 %s248, %s85
    %s250 = sadd.s32 %s95, 2
    %s251 = sld [smem:[#allocation6 + %s250]]
    %v252 = vstv %s243
    %v253 = vmul.f32 %v54, %v252
    %v254 = vstv %s246
    %v255 = vmul.f32 %v56, %v254
    %v256 = vadd.f32 %v253, %v255
    %v257 = vstv %s249
    %v258 = vmul.f32 %v58, %v257
    %v259 = vadd.f32 %v256, %v258
    %v260 = vstv %s251
    %v261 = vmul.f32 %v260, %v78
    %v262 = vmul.f32 %v260, %v79
    %v263 = vmul.f32 %v260, %v80
    %v264 = vmul.f32 %v260, %v81
    %v265 = vmul.f32 %v260, %v82
    %v266 = vmul.f32 %v260, %v83
    %v273 = vcombine.low %v261, %v262
    %v274 = vcombine.low %v263, %v264
    %v275 = vcombine.low %v265, %v266
    %v277 = vunpack.c.l.s4 1966171168
    %v278 = vunpack.c.0.s8 %v277
    %v279 = vlaneseq
    %v280 = vshrl.u32 %v279, 7
    %v281 = vsub.s32 %v278, %v280
    %v282 = vrot.slane %v273, %v281
    %v284 = vunpack.c.l.s4 1966171168
    %v285 = vunpack.c.0.s8 %v284
    %v286 = vlaneseq
    %v287 = vshrl.u32 %v286, 7
    %v288 = vsub.s32 %v285, %v287
    %v289 = vrot.slane %v274, %v288
    %v291 = vunpack.c.l.s4 1966171168
    %v292 = vunpack.c.0.s8 %v291
    %v293 = vlaneseq
    %v294 = vshrl.u32 %v293, 7
    %v295 = vsub.s32 %v292, %v294
    %v296 = vrot.slane %v275, %v295
    %v297 = vcombine.low %v282, %v289
    %v299 = vunpack.c.l.s4 1966171168
    %v300 = vunpack.c.0.s8 %v299
    %v301 = vlaneseq
    %v302 = vshrl.u32 %v301, 7
    %v303 = vsub.s32 %v300, %v302
    %v304 = vrot.slane %v297, %v303
    %v306 = vunpack.c.l.s4 1966171168
    %v307 = vunpack.c.0.s8 %v306
    %v308 = vlaneseq
    %v309 = vshrl.u32 %v308, 7
    %v310 = vsub.s32 %v307, %v309
    %v311 = vrot.slane %v296, %v310
    %v312 = vcombine.low %v304, %v311
    %v314 = vadd.f32 %v259, %v312
    %s315 = scalar_lea.vmem %s4, 2
    %316 = vst.msk [vmem:[%s315] ss:$4 sm:$0x3f] %vm163, %v314
    %s317 = sadd.s32 %s53, 1
    %s318 = sld [smem:[#allocation4 + %s317]]
    %s319 = sand.u32 2147483647, %s318
    %s320 = smul.u32 %s317, 9
    %s321 = sld [smem:[#allocation2 + %s320]]
    %s322 = smul.f32 %s321, %s319
    %s323 = sadd.s32 %s320, 3
    %s324 = sld [smem:[#allocation2 + %s323]]
    %s325 = smul.f32 %s324, %s319
    %s326 = sadd.s32 %s320, 6
    %s327 = sld [smem:[#allocation2 + %s326]]
    %s328 = smul.f32 %s327, %s319
    %s329 = smul.u32 %s317, 3
    %s330 = sld [smem:[#allocation6 + %s329]]
    %v331 = vstv %s322
    %v332 = vmul.f32 %v54, %v331
    %v333 = vstv %s325
    %v334 = vmul.f32 %v56, %v333
    %v335 = vadd.f32 %v332, %v334
    %v336 = vstv %s328
    %v337 = vmul.f32 %v58, %v336
    %v338 = vadd.f32 %v335, %v337
    %v339 = vstv %s330
    %v340 = vmul.f32 %v339, %v78
    %v341 = vmul.f32 %v339, %v79
    %v342 = vmul.f32 %v339, %v80
    %v343 = vmul.f32 %v339, %v81
    %v344 = vmul.f32 %v339, %v82
    %v345 = vmul.f32 %v339, %v83
    %v352 = vcombine.low %v340, %v341
    %v353 = vcombine.low %v342, %v343
    %v354 = vcombine.low %v344, %v345
    %v356 = vunpack.c.l.s4 1966171168
    %v357 = vunpack.c.0.s8 %v356
    %v358 = vlaneseq
    %v359 = vshrl.u32 %v358, 7
    %v360 = vsub.s32 %v357, %v359
    %v361 = vrot.slane %v352, %v360
    %v363 = vunpack.c.l.s4 1966171168
    %v364 = vunpack.c.0.s8 %v363
    %v365 = vlaneseq
    %v366 = vshrl.u32 %v365, 7
    %v367 = vsub.s32 %v364, %v366
    %v368 = vrot.slane %v353, %v367
    %v370 = vunpack.c.l.s4 1966171168
    %v371 = vunpack.c.0.s8 %v370
    %v372 = vlaneseq
    %v373 = vshrl.u32 %v372, 7
    %v374 = vsub.s32 %v371, %v373
    %v375 = vrot.slane %v354, %v374
    %v376 = vcombine.low %v361, %v368
    %v378 = vunpack.c.l.s4 1966171168
    %v379 = vunpack.c.0.s8 %v378
    %v380 = vlaneseq
    %v381 = vshrl.u32 %v380, 7
    %v382 = vsub.s32 %v379, %v381
    %v383 = vrot.slane %v376, %v382
    %v385 = vunpack.c.l.s4 1966171168
    %v386 = vunpack.c.0.s8 %v385
    %v387 = vlaneseq
    %v388 = vshrl.u32 %v387, 7
    %v389 = vsub.s32 %v386, %v388
    %v390 = vrot.slane %v375, %v389
    %v391 = vcombine.low %v383, %v390
    %v393 = vadd.f32 %v338, %v391
    %s394 = scalar_lea.vmem %s4, 24
    %395 = vst.msk [vmem:[%s394] ss:$4 sm:$0x3f] %vm163, %v393
    %s396 = sadd.s32 %s320, 1
    %s397 = sld [smem:[#allocation2 + %s396]]
    %s398 = smul.f32 %s397, %s319
    %s399 = sadd.s32 %s320, 4
    %s400 = sld [smem:[#allocation2 + %s399]]
    %s401 = smul.f32 %s400, %s319
    %s402 = sadd.s32 %s320, 7
    %s403 = sld [smem:[#allocation2 + %s402]]
    %s404 = smul.f32 %s403, %s319
    %s405 = sadd.s32 %s329, 1
    %s406 = sld [smem:[#allocation6 + %s405]]
    %v407 = vstv %s398
    %v408 = vmul.f32 %v54, %v407
    %v409 = vstv %s401
    %v410 = vmul.f32 %v56, %v409
    %v411 = vadd.f32 %v408, %v410
    %v412 = vstv %s404
    %v413 = vmul.f32 %v58, %v412
    %v414 = vadd.f32 %v411, %v413
    %v415 = vstv %s406
    %v416 = vmul.f32 %v415, %v78
    %v417 = vmul.f32 %v415, %v79
    %v418 = vmul.f32 %v415, %v80
    %v419 = vmul.f32 %v415, %v81
    %v420 = vmul.f32 %v415, %v82
    %v421 = vmul.f32 %v415, %v83
    %v428 = vcombine.low %v416, %v417
    %v429 = vcombine.low %v418, %v419
    %v430 = vcombine.low %v420, %v421
    %v432 = vunpack.c.l.s4 1966171168
    %v433 = vunpack.c.0.s8 %v432
    %v434 = vlaneseq
    %v435 = vshrl.u32 %v434, 7
    %v436 = vsub.s32 %v433, %v435
    %v437 = vrot.slane %v428, %v436
    %v439 = vunpack.c.l.s4 1966171168
    %v440 = vunpack.c.0.s8 %v439
    %v441 = vlaneseq
    %v442 = vshrl.u32 %v441, 7
    %v443 = vsub.s32 %v440, %v442
    %v444 = vrot.slane %v429, %v443
    %v446 = vunpack.c.l.s4 1966171168
    %v447 = vunpack.c.0.s8 %v446
    %v448 = vlaneseq
    %v449 = vshrl.u32 %v448, 7
    %v450 = vsub.s32 %v447, %v449
    %v451 = vrot.slane %v430, %v450
    %v452 = vcombine.low %v437, %v444
    %v454 = vunpack.c.l.s4 1966171168
    %v455 = vunpack.c.0.s8 %v454
    %v456 = vlaneseq
    %v457 = vshrl.u32 %v456, 7
    %v458 = vsub.s32 %v455, %v457
    %v459 = vrot.slane %v452, %v458
    %v461 = vunpack.c.l.s4 1966171168
    %v462 = vunpack.c.0.s8 %v461
    %v463 = vlaneseq
    %v464 = vshrl.u32 %v463, 7
    %v465 = vsub.s32 %v462, %v464
    %v466 = vrot.slane %v451, %v465
    %v467 = vcombine.low %v459, %v466
    %v469 = vadd.f32 %v414, %v467
    %s470 = scalar_lea.vmem %s394, 1
    %471 = vst.msk [vmem:[%s470] ss:$4 sm:$0x3f] %vm163, %v469
    %s472 = sadd.s32 %s320, 2
    %s473 = sld [smem:[#allocation2 + %s472]]
    %s474 = smul.f32 %s473, %s319
    %s475 = sadd.s32 %s320, 5
    %s476 = sld [smem:[#allocation2 + %s475]]
    %s477 = smul.f32 %s476, %s319
    %s478 = sadd.s32 %s320, 8
    %s479 = sld [smem:[#allocation2 + %s478]]
    %s480 = smul.f32 %s479, %s319
    %s481 = sadd.s32 %s329, 2
    %s482 = sld [smem:[#allocation6 + %s481]]
    %v483 = vstv %s474
    %v484 = vmul.f32 %v54, %v483
    %v485 = vstv %s477
    %v486 = vmul.f32 %v56, %v485
    %v487 = vadd.f32 %v484, %v486
    %v488 = vstv %s480
    %v489 = vmul.f32 %v58, %v488
    %v490 = vadd.f32 %v487, %v489
    %v491 = vstv %s482
    %v492 = vmul.f32 %v491, %v78
    %v493 = vmul.f32 %v491, %v79
    %v494 = vmul.f32 %v491, %v80
    %v495 = vmul.f32 %v491, %v81
    %v496 = vmul.f32 %v491, %v82
    %v497 = vmul.f32 %v491, %v83
    %v504 = vcombine.low %v492, %v493
    %v505 = vcombine.low %v494, %v495
    %v506 = vcombine.low %v496, %v497
    %v508 = vunpack.c.l.s4 1966171168
    %v509 = vunpack.c.0.s8 %v508
    %v510 = vlaneseq
    %v511 = vshrl.u32 %v510, 7
    %v512 = vsub.s32 %v509, %v511
    %v513 = vrot.slane %v504, %v512
    %v515 = vunpack.c.l.s4 1966171168
    %v516 = vunpack.c.0.s8 %v515
    %v517 = vlaneseq
    %v518 = vshrl.u32 %v517, 7
    %v519 = vsub.s32 %v516, %v518
    %v520 = vrot.slane %v505, %v519
    %v522 = vunpack.c.l.s4 1966171168
    %v523 = vunpack.c.0.s8 %v522
    %v524 = vlaneseq
    %v525 = vshrl.u32 %v524, 7
    %v526 = vsub.s32 %v523, %v525
    %v527 = vrot.slane %v506, %v526
    %v528 = vcombine.low %v513, %v520
    %v530 = vunpack.c.l.s4 1966171168
    %v531 = vunpack.c.0.s8 %v530
    %v532 = vlaneseq
    %v533 = vshrl.u32 %v532, 7
    %v534 = vsub.s32 %v531, %v533
    %v535 = vrot.slane %v528, %v534
    %v537 = vunpack.c.l.s4 1966171168
    %v538 = vunpack.c.0.s8 %v537
    %v539 = vlaneseq
    %v540 = vshrl.u32 %v539, 7
    %v541 = vsub.s32 %v538, %v540
    %v542 = vrot.slane %v527, %v541
    %v543 = vcombine.low %v535, %v542
    %v545 = vadd.f32 %v490, %v543
    %s546 = scalar_lea.vmem %s394, 2
    %547 = vst.msk [vmem:[%s546] ss:$4 sm:$0x3f] %vm163, %v545
    // Predicated region
    $region30: #{pose_prior_transform.1} parent=1 // pred_check
      _
    $region31: #{pose_prior_transform.1} parent=1 // pred_check_branch
      %549 = sbr.rel (0) target = $region33
    $region32: #{pose_prior_transform.1} parent=1 // pred_region
      _
    $region33: #{pose_prior_transform.1} parent=1 // pred_fallthru
      _
    // Predicated region
    $region34: #{pose_prior_transform.1} parent=1 // pred_check
      _
    $region35: #{pose_prior_transform.1} parent=1 // pred_check_branch
      %551 = sbr.rel (0) target = $region37
    $region36: #{pose_prior_transform.1} parent=1 // pred_region
      _
    $region37: #{pose_prior_transform.1} parent=1 // pred_fallthru
      _
    %552 = vsyncpa [#allocation3], 1
    %553 = vsyncpa [#allocation5], 1

</llo_original>
